<compile_context>
chip_gen: v6e
topology: v6e:2x2x1
jax: 0.10.0
libtpu: 0.0.40
codegen_flags: <defaults>
</compile_context>

<pallas_src>
import functools

import jax
import jax.numpy as jnp
from jax.experimental import pallas as pl
from jax.experimental.pallas import tpu as pltpu


def conv1x1_kernel(x_ref, w_ref, o_ref, *, cin):
    # x_ref: (P, Cin)          pixels x input channels (f32)
    # w_ref: (Cin + 1, Cout)   rows 0..Cin-1 = pre-transposed weight (MXU-native
    #                          RHS orientation), row Cin = bias.  f32 or bf16.
    # o_ref: (P, Cout)
    x = x_ref[...].astype(w_ref.dtype)            # free in-kernel cast (VPU)
    w = w_ref[0:cin, :]                           # (Cin, Cout), sublane-aligned slice
    b = w_ref[cin:cin + 1, :]                     # (1, Cout) folded bias row
    acc = jax.lax.dot_general(
        x, w,
        dimension_numbers=(((1,), (0,)), ((), ())),   # contract Cin (lane) with Cin (sublane)
        preferred_element_type=jnp.float32,           # f32 accumulation on MXU
    )
    o_ref[...] = (acc + b.astype(jnp.float32)).astype(o_ref.dtype)


def prepare_conv1x1_params(weight, bias, *, param_dtype=None):
    """One-time parameter prep (hoisted out of the per-call path).

    weight: (Cout, Cin, 1, 1) -> transposed to (Cin, Cout)  [MXU-native RHS]
    bias:   (Cout,)           -> appended as the last row of the same buffer
    param_dtype: optional storage dtype (e.g. jnp.bfloat16 halves the weight
                 DMA; accumulation stays f32 in-kernel).

    Returns a single (Cin + 1, Cout) buffer: one DMA descriptor per call.
    """
    Cout, Cin = weight.shape[0], weight.shape[1]
    dt = jnp.float32 if param_dtype is None else param_dtype
    w_t = jnp.transpose(weight.reshape(Cout, Cin), (1, 0)).astype(dt)   # (Cin, Cout)
    b_row = bias.reshape(1, Cout).astype(dt)                            # (1, Cout)
    return jnp.concatenate([w_t, b_row], axis=0)                        # (Cin+1, Cout)


def conv2d_1x1(x_nchw, w_aug):
    """1x1 conv, stride 1, no padding.  w_aug: (Cin + 1, Cout) from prep."""
    N, Cin, H, W = x_nchw.shape
    Cout = w_aug.shape[1]
    assert w_aug.shape[0] == Cin + 1
    P = N * H * W

    # Layout plumbing only (x is ~2.6 KiB; at H=W=1 this is a trivial reshape).
    x2d = jnp.transpose(x_nchw, (0, 2, 3, 1)).reshape(P, Cin)

    # Advisory cost hint so XLA can overlap this tiny call with neighbors.
    itemsize = lambda a: jnp.dtype(a.dtype).itemsize
    cost = pl.CostEstimate(
        flops=2 * P * Cin * Cout,
        transcendentals=0,
        bytes_accessed=(x2d.size * itemsize(x2d)
                        + w_aug.size * itemsize(w_aug)
                        + P * Cout * itemsize(x_nchw)),
    )

    out2d = pl.pallas_call(
        functools.partial(conv1x1_kernel, cin=Cin),
        out_shape=jax.ShapeDtypeStruct((P, Cout), x_nchw.dtype),
        # Tiny problem -> whole arrays as single VMEM blocks, no grid.
        in_specs=[
            pl.BlockSpec(memory_space=pltpu.MemorySpace.VMEM),
            pl.BlockSpec(memory_space=pltpu.MemorySpace.VMEM),
        ],
        out_specs=pl.BlockSpec(memory_space=pltpu.MemorySpace.VMEM),
        cost_estimate=cost,
    )(x2d, w_aug)

    # Back to NCHW.
    return jnp.transpose(out2d.reshape(N, H, W, Cout), (0, 3, 1, 2))


if __name__ == "__main__":
    key = jax.random.PRNGKey(0)
    k_x, k_w, k_b = jax.random.split(key, 3)

    N, Cin, H, W = 1, 672, 1, 1
    Cout = 168

    # Deterministic synthetic parameters (PyTorch-style uniform(-k, k), k = 1/sqrt(fan_in)).
    fan_in = Cin * 1 * 1
    bound = 1.0 / (fan_in ** 0.5)
    weight = jax.random.uniform(k_w, (Cout, Cin, 1, 1), jnp.float32, -bound, bound)
    bias = jax.random.uniform(k_b, (Cout,), jnp.float32, -bound, bound)

    x141 = jax.random.normal(k_x, (N, Cin, H, W), jnp.float32)

    # Plain-JAX reference (matches the PyTorch module semantics).
    ref = (jnp.einsum("nchw,oc->nohw", x141, weight.reshape(Cout, Cin))
           + bias.reshape(1, Cout, 1, 1))

    # --- f32 path: exact module semantics -----------------------------------
    w_aug_f32 = prepare_conv1x1_params(weight, bias)          # one-time prep
    x142 = conv2d_1x1(x141, w_aug_f32)
    jax.block_until_ready(x142)
    assert x142.shape == (N, Cout, H, W)
    assert jnp.allclose(x142, ref, atol=1e-5, rtol=1e-5)

    # --- bf16-param path: halves the weight DMA (activation+weight+bias bf16,
    #     f32 accumulation; recommended default on v5e) ----------------------
    w_aug_bf16 = prepare_conv1x1_params(weight, bias, param_dtype=jnp.bfloat16)
    x142_bf16 = conv2d_1x1(x141, w_aug_bf16)
    jax.block_until_ready(x142_bf16)
    assert x142_bf16.shape == (N, Cout, H, W)
    assert jnp.allclose(x142_bf16, ref, atol=5e-2, rtol=5e-2)

    print("KERNEL_OK")
</pallas_src>

<mosaic_0001>
module attributes {stable_mosaic.version = 11 : i64} {
  func.func @conv1x1_kernel(%arg0: memref<1x672xf32, #tpu.memory_space<vmem>>, %arg1: memref<673x168xf32, #tpu.memory_space<vmem>>, %arg2: memref<1x168xf32, #tpu.memory_space<vmem>>) attributes {dimension_semantics = [], scalar_prefetch = 0 : i64, scratch_operands = 0 : i64, tpu.core_type = #tpu.core_type<tc>} {
    %c0 = arith.constant 0 : index
    %c0_0 = arith.constant 0 : index
    %0 = vector.load %arg0[%c0, %c0_0] : memref<1x672xf32, #tpu.memory_space<vmem>>, vector<1x672xf32>
    %c0_1 = arith.constant 0 : index
    %c0_2 = arith.constant 0 : index
    %1 = vector.load %arg1[%c0_1, %c0_2] : memref<673x168xf32, #tpu.memory_space<vmem>>, vector<672x168xf32>
    %c672 = arith.constant 672 : index
    %c0_3 = arith.constant 0 : index
    %2 = vector.load %arg1[%c672, %c0_3] : memref<673x168xf32, #tpu.memory_space<vmem>>, vector<1x168xf32>
    %cst = arith.constant dense<0.000000e+00> : vector<1x168xf32>
    %3 = tpu.matmul %0, %1, %cst {dimension_numbers = #tpu.dot_dimension_numbers<[1], [0], [0], [1], [0, 0, 1, 1], [], []>} : vector<1x672xf32>, vector<672x168xf32>, vector<1x168xf32> -> vector<1x168xf32>
    %4 = arith.addf %3, %2 : vector<1x168xf32>
    %c0_4 = arith.constant 0 : index
    %c0_5 = arith.constant 0 : index
    %5 = vector.load %arg2[%c0_4, %c0_5] : memref<1x168xf32, #tpu.memory_space<vmem>>, vector<1x168xf32>
    tpu.vector_store %arg2[%c0_4, %c0_5], %4 {strides = array<i32>} : memref<1x168xf32, #tpu.memory_space<vmem>>, vector<1x168xf32>,
    return
  }
}

</mosaic_0001>

<llo_original>
// kernel: tpu_custom_call.1
$region0: #{tpu_custom_call.1}
  #allocation0 [shape = 'u32[]', space=smem, size = 0x4, offset = 0x4, fixed_abs, tag = 'smem constant byte address 0x4 - core index']
  #allocation1 [shape = 'u32[144,128]{1,0:T(1,128)}', space=vmem, size = 0x12000, scoped, tag = 'internal scratch']
  %s0 = inlined_call_operand.vmem [shape: f32[1,672], index: 0, kind: input, shape index: {}]
  %s1 = inlined_call_operand.vmem [shape: f32[673,168], index: 1, kind: input, shape index: {}]
  %s2 = inlined_call_operand.hbm [shape: f32[1,168], index: 2, kind: output, shape index: {}]
  %s3 = sld [smem:[#allocation0]]
  $region18: #{tpu_custom_call.1} parent=0
    _
  %s5 = ssub.s32 1, %s3
  %s6 = scalar_select 0, %s5, %s3
  $region1: #{tpu_custom_call.1} parent=0
    #allocation2 [shape = 'u8[1024]{0}', space=vmem, size = 0x400, scoped, tag = 'output window, operand 0, single buffered']
    #allocation3 [shape = 's32[1]{0}', space=sflag, size = 0x4, scoped, tag = 'scoped memory for tpu_custom_call.1']
    %7 = vsyncpa [#allocation3], 0
    // Predicated region
    $region2: #{tpu_custom_call.1} parent=1 // pred_check
      _
    $region3: #{tpu_custom_call.1} parent=1 // pred_check_branch
      %9 = sbr.rel (0) target = $region5
    $region4: #{tpu_custom_call.1} parent=1 // pred_region
      _
    $region5: #{tpu_custom_call.1} parent=1 // pred_fallthru
      _
    // Predicated region
    $region6: #{tpu_custom_call.1} parent=1 // pred_check
      _
    $region7: #{tpu_custom_call.1} parent=1 // pred_check_branch
      %11 = sbr.rel (0) target = $region9
    $region8: #{tpu_custom_call.1} parent=1 // pred_region
      _
    $region9: #{tpu_custom_call.1} parent=1 // pred_fallthru
      _
    %v12 = vld [vmem:[%s0] sm:$0x3f]
    %v13 = vld [vmem:[%s1] sm:$0xff]
    %v14 = vld [vmem:[%s1 + $0x8] sm:$0xff]
    %v15 = vld [vmem:[%s1 + $0x10] sm:$0xff]
    %v16 = vld [vmem:[%s1 + $0x18] sm:$0xff]
    %v17 = vld [vmem:[%s1 + $0x20] sm:$0xff]
    %v18 = vld [vmem:[%s1 + $0x28] sm:$0xff]
    %v19 = vld [vmem:[%s1 + $0x30] sm:$0xff]
    %v20 = vld [vmem:[%s1 + $0x38] sm:$0xff]
    %v21 = vld [vmem:[%s1 + $0x40] sm:$0xff]
    %v22 = vld [vmem:[%s1 + $0x48] sm:$0xff]
    %v23 = vld [vmem:[%s1 + $0x50] sm:$0xff]
    %v24 = vld [vmem:[%s1 + $0x58] sm:$0xff]
    %v25 = vld [vmem:[%s1 + $0x60] sm:$0xff]
    %v26 = vld [vmem:[%s1 + $0x68] sm:$0xff]
    %v27 = vld [vmem:[%s1 + $0x70] sm:$0xff]
    %v28 = vld [vmem:[%s1 + $0x78] sm:$0xff]
    %v29 = vld [vmem:[%s1 + $0x80] sm:$0xff]
    %v30 = vld [vmem:[%s1 + $0x88] sm:$0xff]
    %v31 = vld [vmem:[%s1 + $0x90] sm:$0xff]
    %v32 = vld [vmem:[%s1 + $0x98] sm:$0xff]
    %v33 = vld [vmem:[%s1 + $0xa0] sm:$0xff]
    %v34 = vld [vmem:[%s1 + $0xa8] sm:$0xff]
    %v35 = vld [vmem:[%s1 + $0xb0] sm:$0xff]
    %v36 = vld [vmem:[%s1 + $0xb8] sm:$0xff]
    %v37 = vld [vmem:[%s1 + $0xc0] sm:$0xff]
    %v38 = vld [vmem:[%s1 + $0xc8] sm:$0xff]
    %v39 = vld [vmem:[%s1 + $0xd0] sm:$0xff]
    %v40 = vld [vmem:[%s1 + $0xd8] sm:$0xff]
    %v41 = vld [vmem:[%s1 + $0xe0] sm:$0xff]
    %v42 = vld [vmem:[%s1 + $0xe8] sm:$0xff]
    %v43 = vld [vmem:[%s1 + $0xf0] sm:$0xff]
    %v44 = vld [vmem:[%s1 + $0xf8] sm:$0xff]
    %v45 = vld [vmem:[%s1 + $0x100] sm:$0xff]
    %v46 = vld [vmem:[%s1 + $0x108] sm:$0xff]
    %v47 = vld [vmem:[%s1 + $0x110] sm:$0xff]
    %v48 = vld [vmem:[%s1 + $0x118] sm:$0xff]
    %v49 = vld [vmem:[%s1 + $0x120] sm:$0xff]
    %v50 = vld [vmem:[%s1 + $0x128] sm:$0xff]
    %v51 = vld [vmem:[%s1 + $0x130] sm:$0xff]
    %v52 = vld [vmem:[%s1 + $0x138] sm:$0xff]
    %v53 = vld [vmem:[%s1 + $0x140] sm:$0xff]
    %v54 = vld [vmem:[%s1 + $0x148] sm:$0xff]
    %v55 = vld [vmem:[%s1 + $0x150] sm:$0xff]
    %v56 = vld [vmem:[%s1 + $0x158] sm:$0xff]
    %v57 = vld [vmem:[%s1 + $0x160] sm:$0xff]
    %v58 = vld [vmem:[%s1 + $0x168] sm:$0xff]
    %v59 = vld [vmem:[%s1 + $0x170] sm:$0xff]
    %v60 = vld [vmem:[%s1 + $0x178] sm:$0xff]
    %v61 = vld [vmem:[%s1 + $0x180] sm:$0xff]
    %v62 = vld [vmem:[%s1 + $0x188] sm:$0xff]
    %v63 = vld [vmem:[%s1 + $0x190] sm:$0xff]
    %v64 = vld [vmem:[%s1 + $0x198] sm:$0xff]
    %v65 = vld [vmem:[%s1 + $0x1a0] sm:$0xff]
    %v66 = vld [vmem:[%s1 + $0x1a8] sm:$0xff]
    %v67 = vld [vmem:[%s1 + $0x1b0] sm:$0xff]
    %v68 = vld [vmem:[%s1 + $0x1b8] sm:$0xff]
    %v69 = vld [vmem:[%s1 + $0x1c0] sm:$0xff]
    %v70 = vld [vmem:[%s1 + $0x1c8] sm:$0xff]
    %v71 = vld [vmem:[%s1 + $0x1d0] sm:$0xff]
    %v72 = vld [vmem:[%s1 + $0x1d8] sm:$0xff]
    %v73 = vld [vmem:[%s1 + $0x1e0] sm:$0xff]
    %v74 = vld [vmem:[%s1 + $0x1e8] sm:$0xff]
    %v75 = vld [vmem:[%s1 + $0x1f0] sm:$0xff]
    %v76 = vld [vmem:[%s1 + $0x1f8] sm:$0xff]
    %v77 = vld [vmem:[%s1 + $0x200] sm:$0xff]
    %v78 = vld [vmem:[%s1 + $0x208] sm:$0xff]
    %v79 = vld [vmem:[%s1 + $0x210] sm:$0xff]
    %v80 = vld [vmem:[%s1 + $0x218] sm:$0xff]
    %v81 = vld [vmem:[%s1 + $0x220] sm:$0xff]
    %v82 = vld [vmem:[%s1 + $0x228] sm:$0xff]
    %v83 = vld [vmem:[%s1 + $0x230] sm:$0xff]
    %v84 = vld [vmem:[%s1 + $0x238] sm:$0xff]
    %v85 = vld [vmem:[%s1 + $0x240] sm:$0xff]
    %v86 = vld [vmem:[%s1 + $0x248] sm:$0xff]
    %v87 = vld [vmem:[%s1 + $0x250] sm:$0xff]
    %v88 = vld [vmem:[%s1 + $0x258] sm:$0xff]
    %v89 = vld [vmem:[%s1 + $0x260] sm:$0xff]
    %v90 = vld [vmem:[%s1 + $0x268] sm:$0xff]
    %v91 = vld [vmem:[%s1 + $0x270] sm:$0xff]
    %v92 = vld [vmem:[%s1 + $0x278] sm:$0xff]
    %v93 = vld [vmem:[%s1 + $0x280] sm:$0xff]
    %v94 = vld [vmem:[%s1 + $0x288] sm:$0xff]
    %v95 = vld [vmem:[%s1 + $0x290] sm:$0xff]
    %v96 = vld [vmem:[%s1 + $0x298] sm:$0xff]
    %v97 = vld [vmem:[%s1 + $0x2a0] sm:$0xff]
    %v98 = vld [vmem:[%s1 + $0x2a8] sm:$0xff]
    %v99 = vld [vmem:[%s1 + $0x2b0] sm:$0xff]
    %v100 = vld [vmem:[%s1 + $0x2b8] sm:$0xff]
    %v101 = vld [vmem:[%s1 + $0x2c0] sm:$0xff]
    %v102 = vld [vmem:[%s1 + $0x2c8] sm:$0xff]
    %v103 = vld [vmem:[%s1 + $0x2d0] sm:$0xff]
    %v104 = vld [vmem:[%s1 + $0x2d8] sm:$0xff]
    %v105 = vld [vmem:[%s1 + $0x2e0] sm:$0xff]
    %v106 = vld [vmem:[%s1 + $0x2e8] sm:$0xff]
    %v107 = vld [vmem:[%s1 + $0x2f0] sm:$0xff]
    %v108 = vld [vmem:[%s1 + $0x2f8] sm:$0xff]
    %v109 = vld [vmem:[%s1 + $0x300] sm:$0xff]
    %v110 = vld [vmem:[%s1 + $0x308] sm:$0xff]
    %v111 = vld [vmem:[%s1 + $0x310] sm:$0xff]
    %v112 = vld [vmem:[%s1 + $0x318] sm:$0xff]
    %v113 = vld [vmem:[%s1 + $0x320] sm:$0xff]
    %v114 = vld [vmem:[%s1 + $0x328] sm:$0xff]
    %v115 = vld [vmem:[%s1 + $0x330] sm:$0xff]
    %v116 = vld [vmem:[%s1 + $0x338] sm:$0xff]
    %v117 = vld [vmem:[%s1 + $0x340] sm:$0xff]
    %v118 = vld [vmem:[%s1 + $0x348] sm:$0xff]
    %v119 = vld [vmem:[%s1 + $0x350] sm:$0xff]
    %v120 = vld [vmem:[%s1 + $0x358] sm:$0xff]
    %v121 = vld [vmem:[%s1 + $0x360] sm:$0xff]
    %v122 = vld [vmem:[%s1 + $0x368] sm:$0xff]
    %v123 = vld [vmem:[%s1 + $0x370] sm:$0xff]
    %v124 = vld [vmem:[%s1 + $0x378] sm:$0xff]
    %v125 = vld [vmem:[%s1 + $0x380] sm:$0xff]
    %v126 = vld [vmem:[%s1 + $0x388] sm:$0xff]
    %v127 = vld [vmem:[%s1 + $0x390] sm:$0xff]
    %v128 = vld [vmem:[%s1 + $0x398] sm:$0xff]
    %v129 = vld [vmem:[%s1 + $0x3a0] sm:$0xff]
    %v130 = vld [vmem:[%s1 + $0x3a8] sm:$0xff]
    %v131 = vld [vmem:[%s1 + $0x3b0] sm:$0xff]
    %v132 = vld [vmem:[%s1 + $0x3b8] sm:$0xff]
    %v133 = vld [vmem:[%s1 + $0x3c0] sm:$0xff]
    %v134 = vld [vmem:[%s1 + $0x3c8] sm:$0xff]
    %v135 = vld [vmem:[%s1 + $0x3d0] sm:$0xff]
    %v136 = vld [vmem:[%s1 + $0x3d8] sm:$0xff]
    %v137 = vld [vmem:[%s1 + $0x3e0] sm:$0xff]
    %v138 = vld [vmem:[%s1 + $0x3e8] sm:$0xff]
    %v139 = vld [vmem:[%s1 + $0x3f0] sm:$0xff]
    %v140 = vld [vmem:[%s1 + $0x3f8] sm:$0xff]
    %v141 = vld [vmem:[%s1 + $0x400] sm:$0xff]
    %v142 = vld [vmem:[%s1 + $0x408] sm:$0xff]
    %v143 = vld [vmem:[%s1 + $0x410] sm:$0xff]
    %v144 = vld [vmem:[%s1 + $0x418] sm:$0xff]
    %v145 = vld [vmem:[%s1 + $0x420] sm:$0xff]
    %v146 = vld [vmem:[%s1 + $0x428] sm:$0xff]
    %v147 = vld [vmem:[%s1 + $0x430] sm:$0xff]
    %v148 = vld [vmem:[%s1 + $0x438] sm:$0xff]
    %v149 = vld [vmem:[%s1 + $0x440] sm:$0xff]
    %v150 = vld [vmem:[%s1 + $0x448] sm:$0xff]
    %v151 = vld [vmem:[%s1 + $0x450] sm:$0xff]
    %v152 = vld [vmem:[%s1 + $0x458] sm:$0xff]
    %v153 = vld [vmem:[%s1 + $0x460] sm:$0xff]
    %v154 = vld [vmem:[%s1 + $0x468] sm:$0xff]
    %v155 = vld [vmem:[%s1 + $0x470] sm:$0xff]
    %v156 = vld [vmem:[%s1 + $0x478] sm:$0xff]
    %v157 = vld [vmem:[%s1 + $0x480] sm:$0xff]
    %v158 = vld [vmem:[%s1 + $0x488] sm:$0xff]
    %v159 = vld [vmem:[%s1 + $0x490] sm:$0xff]
    %v160 = vld [vmem:[%s1 + $0x498] sm:$0xff]
    %v161 = vld [vmem:[%s1 + $0x4a0] sm:$0xff]
    %v162 = vld [vmem:[%s1 + $0x4a8] sm:$0xff]
    %v163 = vld [vmem:[%s1 + $0x4b0] sm:$0xff]
    %v164 = vld [vmem:[%s1 + $0x4b8] sm:$0xff]
    %v165 = vld [vmem:[%s1 + $0x4c0] sm:$0xff]
    %v166 = vld [vmem:[%s1 + $0x4c8] sm:$0xff]
    %v167 = vld [vmem:[%s1 + $0x4d0] sm:$0xff]
    %v168 = vld [vmem:[%s1 + $0x4d8] sm:$0xff]
    %v169 = vld [vmem:[%s1 + $0x4e0] sm:$0xff]
    %v170 = vld [vmem:[%s1 + $0x4e8] sm:$0xff]
    %v171 = vld [vmem:[%s1 + $0x4f0] sm:$0xff]
    %v172 = vld [vmem:[%s1 + $0x4f8] sm:$0xff]
    %v173 = vld [vmem:[%s1 + $0x500] sm:$0xff]
    %v174 = vld [vmem:[%s1 + $0x508] sm:$0xff]
    %v175 = vld [vmem:[%s1 + $0x510] sm:$0xff]
    %v176 = vld [vmem:[%s1 + $0x518] sm:$0xff]
    %v177 = vld [vmem:[%s1 + $0x520] sm:$0xff]
    %v178 = vld [vmem:[%s1 + $0x528] sm:$0xff]
    %v179 = vld [vmem:[%s1 + $0x530] sm:$0xff]
    %v180 = vld [vmem:[%s1 + $0x538] sm:$0xff]
    %s181 = scalar_lea.vmem %s1, 1344
    %v182 = vld [vmem:[%s181] ss:$8 sm:$0x3]
    %v184 = vlaneseq
    %v185 = vshrl.u32 %v184, 7
    %v186 = vsub.s32 0, %v185
    %v187 = vrot.slane %v12, %v186
    %v188 = vlaneseq
    %v189 = vshrl.u32 %v188, 7
    %v190 = vsub.s32 1, %v189
    %v191 = vrot.slane %v12, %v190
    %v192 = vlaneseq
    %v193 = vshrl.u32 %v192, 7
    %v194 = vsub.s32 2, %v193
    %v195 = vrot.slane %v12, %v194
    %v196 = vlaneseq
    %v197 = vshrl.u32 %v196, 7
    %v198 = vsub.s32 3, %v197
    %v199 = vrot.slane %v12, %v198
    %v200 = vlaneseq
    %v201 = vshrl.u32 %v200, 7
    %v202 = vsub.s32 4, %v201
    %v203 = vrot.slane %v12, %v202
    %v204 = vlaneseq
    %v205 = vshrl.u32 %v204, 7
    %v206 = vsub.s32 5, %v205
    %v207 = vrot.slane %v12, %v206
    %v214 = vlaneseq
    %v215 = vshrl.u32 %v214, 7
    %v216 = vsub.s32 0, %v215
    %v217 = vrot.slane %v182, %v216
    %v218 = vlaneseq
    %v219 = vshrl.u32 %v218, 7
    %v220 = vsub.s32 1, %v219
    %v221 = vrot.slane %v182, %v220
    %vm224 = vcmask 261120
    %v225 = vsel %vm224, %v207, 0
    %227 = vmatprep.subr.mxu0 %v44
    %228 = vmatpush1.msra.mxu0 %v43
    %229 = vmatprep.subr.mxu0 %v42
    %230 = vmatpush1.msra.mxu0 %v41
    %231 = vmatprep.subr.mxu0 %v40
    %232 = vmatpush1.msra.mxu0 %v39
    %233 = vmatprep.subr.mxu0 %v38
    %234 = vmatpush1.msra.mxu0 %v37
    %235 = vmatprep.subr.mxu0 %v36
    %236 = vmatpush1.msra.mxu0 %v35
    %237 = vmatprep.subr.mxu0 %v34
    %238 = vmatpush1.msra.mxu0 %v33
    %239 = vmatprep.subr.mxu0 %v32
    %240 = vmatpush1.msra.mxu0 %v31
    %241 = vmatprep.subr.mxu0 %v30
    %242 = vmatpush1.msra.mxu0 %v29
    %243 = vmatprep.subr.mxu0 %v28
    %244 = vmatpush1.msra.mxu0 %v27
    %245 = vmatprep.subr.mxu0 %v26
    %246 = vmatpush1.msra.mxu0 %v25
    %247 = vmatprep.subr.mxu0 %v24
    %248 = vmatpush1.msra.mxu0 %v23
    %249 = vmatprep.subr.mxu0 %v22
    %250 = vmatpush1.msra.mxu0 %v21
    %251 = vmatprep.subr.mxu0 %v20
    %252 = vmatpush1.msra.mxu0 %v19
    %253 = vmatprep.subr.mxu0 %v18
    %254 = vmatpush1.msra.mxu0 %v17
    %255 = vmatprep.subr.mxu0 %v16
    %256 = vmatpush1.msra.mxu0 %v15
    %257 = vmatprep.subr.mxu0 %v14
    %258 = vmatpush1.msra.mxu0 %v13
    %259 = vmatprep.subr.mxu0 %v76
    %260 = vmatpush2.msra.mxu0 %v75
    %261 = vmatprep.subr.mxu0 %v74
    %262 = vmatpush2.msra.mxu0 %v73
    %263 = vmatprep.subr.mxu0 %v72
    %264 = vmatpush2.msra.mxu0 %v71
    %265 = vmatprep.subr.mxu0 %v70
    %266 = vmatpush2.msra.mxu0 %v69
    %267 = vmatprep.subr.mxu0 %v68
    %268 = vmatpush2.msra.mxu0 %v67
    %269 = vmatprep.subr.mxu0 %v66
    %270 = vmatpush2.msra.mxu0 %v65
    %271 = vmatprep.subr.mxu0 %v64
    %272 = vmatpush2.msra.mxu0 %v63
    %273 = vmatprep.subr.mxu0 %v62
    %274 = vmatpush2.msra.mxu0 %v61
    %275 = vmatprep.subr.mxu0 %v60
    %276 = vmatpush2.msra.mxu0 %v59
    %277 = vmatprep.subr.mxu0 %v58
    %278 = vmatpush2.msra.mxu0 %v57
    %279 = vmatprep.subr.mxu0 %v56
    %280 = vmatpush2.msra.mxu0 %v55
    %281 = vmatprep.subr.mxu0 %v54
    %282 = vmatpush2.msra.mxu0 %v53
    %283 = vmatprep.subr.mxu0 %v52
    %284 = vmatpush2.msra.mxu0 %v51
    %285 = vmatprep.subr.mxu0 %v50
    %286 = vmatpush2.msra.mxu0 %v49
    %287 = vmatprep.subr.mxu0 %v48
    %288 = vmatpush2.msra.mxu0 %v47
    %289 = vmatprep.subr.mxu0 %v46
    %290 = vmatpush2.msra.mxu0 %v45
    %291 = vmatprep.mubr.f32.mxu0 %v191
    %292 = vmatmul.mubr.f32.gmra.mxu0 %v187
    %v293 = vpop.f32.mrf.mxu0
    %v294 = vadd.f32 %v217, %v293
    %v295 = vpop.f32.mrf.mxu0
    %v296 = vadd.f32 %v221, %v295
    %297 = vdwg.mxu0
    %298 = vmatprep.subr.mxu0 %v108
    %299 = vmatpush1.msra.mxu0 %v107
    %300 = vmatprep.subr.mxu0 %v106
    %301 = vmatpush1.msra.mxu0 %v105
    %302 = vmatprep.subr.mxu0 %v104
    %303 = vmatpush1.msra.mxu0 %v103
    %304 = vmatprep.subr.mxu0 %v102
    %305 = vmatpush1.msra.mxu0 %v101
    %306 = vmatprep.subr.mxu0 %v100
    %307 = vmatpush1.msra.mxu0 %v99
    %308 = vmatprep.subr.mxu0 %v98
    %309 = vmatpush1.msra.mxu0 %v97
    %310 = vmatprep.subr.mxu0 %v96
    %311 = vmatpush1.msra.mxu0 %v95
    %312 = vmatprep.subr.mxu0 %v94
    %313 = vmatpush1.msra.mxu0 %v93
    %314 = vmatprep.subr.mxu0 %v92
    %315 = vmatpush1.msra.mxu0 %v91
    %316 = vmatprep.subr.mxu0 %v90
    %317 = vmatpush1.msra.mxu0 %v89
    %318 = vmatprep.subr.mxu0 %v88
    %319 = vmatpush1.msra.mxu0 %v87
    %320 = vmatprep.subr.mxu0 %v86
    %321 = vmatpush1.msra.mxu0 %v85
    %322 = vmatprep.subr.mxu0 %v84
    %323 = vmatpush1.msra.mxu0 %v83
    %324 = vmatprep.subr.mxu0 %v82
    %325 = vmatpush1.msra.mxu0 %v81
    %326 = vmatprep.subr.mxu0 %v80
    %327 = vmatpush1.msra.mxu0 %v79
    %328 = vmatprep.subr.mxu0 %v78
    %329 = vmatpush1.msra.mxu0 %v77
    %330 = vmatprep.subr.mxu0 %v140
    %331 = vmatpush2.msra.mxu0 %v139
    %332 = vmatprep.subr.mxu0 %v138
    %333 = vmatpush2.msra.mxu0 %v137
    %334 = vmatprep.subr.mxu0 %v136
    %335 = vmatpush2.msra.mxu0 %v135
    %336 = vmatprep.subr.mxu0 %v134
    %337 = vmatpush2.msra.mxu0 %v133
    %338 = vmatprep.subr.mxu0 %v132
    %339 = vmatpush2.msra.mxu0 %v131
    %340 = vmatprep.subr.mxu0 %v130
    %341 = vmatpush2.msra.mxu0 %v129
    %342 = vmatprep.subr.mxu0 %v128
    %343 = vmatpush2.msra.mxu0 %v127
    %344 = vmatprep.subr.mxu0 %v126
    %345 = vmatpush2.msra.mxu0 %v125
    %346 = vmatprep.subr.mxu0 %v124
    %347 = vmatpush2.msra.mxu0 %v123
    %348 = vmatprep.subr.mxu0 %v122
    %349 = vmatpush2.msra.mxu0 %v121
    %350 = vmatprep.subr.mxu0 %v120
    %351 = vmatpush2.msra.mxu0 %v119
    %352 = vmatprep.subr.mxu0 %v118
    %353 = vmatpush2.msra.mxu0 %v117
    %354 = vmatprep.subr.mxu0 %v116
    %355 = vmatpush2.msra.mxu0 %v115
    %356 = vmatprep.subr.mxu0 %v114
    %357 = vmatpush2.msra.mxu0 %v113
    %358 = vmatprep.subr.mxu0 %v112
    %359 = vmatpush2.msra.mxu0 %v111
    %360 = vmatprep.subr.mxu0 %v110
    %361 = vmatpush2.msra.mxu0 %v109
    %362 = vmatprep.mubr.f32.mxu0 %v199
    %363 = vmatmul.mubr.f32.gmra.mxu0 %v195
    %v364 = vpop.f32.mrf.mxu0
    %v365 = vadd.f32 %v294, %v364
    %v366 = vpop.f32.mrf.mxu0
    %v367 = vadd.f32 %v296, %v366
    %368 = vdwg.mxu0
    %369 = vmatprep.subr.mxu0 %v172
    %370 = vmatpush1.msra.mxu0 %v171
    %371 = vmatprep.subr.mxu0 %v170
    %372 = vmatpush1.msra.mxu0 %v169
    %373 = vmatprep.subr.mxu0 %v168
    %374 = vmatpush1.msra.mxu0 %v167
    %375 = vmatprep.subr.mxu0 %v166
    %376 = vmatpush1.msra.mxu0 %v165
    %377 = vmatprep.subr.mxu0 %v164
    %378 = vmatpush1.msra.mxu0 %v163
    %379 = vmatprep.subr.mxu0 %v162
    %380 = vmatpush1.msra.mxu0 %v161
    %381 = vmatprep.subr.mxu0 %v160
    %382 = vmatpush1.msra.mxu0 %v159
    %383 = vmatprep.subr.mxu0 %v158
    %384 = vmatpush1.msra.mxu0 %v157
    %385 = vmatprep.subr.mxu0 %v156
    %386 = vmatpush1.msra.mxu0 %v155
    %387 = vmatprep.subr.mxu0 %v154
    %388 = vmatpush1.msra.mxu0 %v153
    %389 = vmatprep.subr.mxu0 %v152
    %390 = vmatpush1.msra.mxu0 %v151
    %391 = vmatprep.subr.mxu0 %v150
    %392 = vmatpush1.msra.mxu0 %v149
    %393 = vmatprep.subr.mxu0 %v148
    %394 = vmatpush1.msra.mxu0 %v147
    %395 = vmatprep.subr.mxu0 %v146
    %396 = vmatpush1.msra.mxu0 %v145
    %397 = vmatprep.subr.mxu0 %v144
    %398 = vmatpush1.msra.mxu0 %v143
    %399 = vmatprep.subr.mxu0 %v142
    %400 = vmatpush1.msra.mxu0 %v141
    %401 = vmatprep.subr.mxu0 0.0
    %402 = vmatpush2.msra.mxu0 0.0
    %403 = vmatprep.subr.mxu0 0.0
    %404 = vmatpush2.msra.mxu0 0.0
    %405 = vmatprep.subr.mxu0 0.0
    %406 = vmatpush2.msra.mxu0 0.0
    %407 = vmatprep.subr.mxu0 0.0
    %408 = vmatpush2.msra.mxu0 0.0
    %409 = vmatprep.subr.mxu0 0.0
    %410 = vmatpush2.msra.mxu0 0.0
    %411 = vmatprep.subr.mxu0 0.0
    %412 = vmatpush2.msra.mxu0 0.0
    %413 = vmatprep.subr.mxu0 0.0
    %414 = vmatpush2.msra.mxu0 0.0
    %415 = vmatprep.subr.mxu0 0.0
    %416 = vmatpush2.msra.mxu0 0.0
    %417 = vmatprep.subr.mxu0 0.0
    %418 = vmatpush2.msra.mxu0 0.0
    %419 = vmatprep.subr.mxu0 0.0
    %420 = vmatpush2.msra.mxu0 0.0
    %421 = vmatprep.subr.mxu0 0.0
    %422 = vmatpush2.msra.mxu0 0.0
    %423 = vmatprep.subr.mxu0 0.0
    %424 = vmatpush2.msra.mxu0 0.0
    %425 = vmatprep.subr.mxu0 %v180
    %426 = vmatpush2.msra.mxu0 %v179
    %427 = vmatprep.subr.mxu0 %v178
    %428 = vmatpush2.msra.mxu0 %v177
    %429 = vmatprep.subr.mxu0 %v176
    %430 = vmatpush2.msra.mxu0 %v175
    %431 = vmatprep.subr.mxu0 %v174
    %432 = vmatpush2.msra.mxu0 %v173
    %433 = vmatprep.mubr.f32.mxu0 %v225
    %434 = vmatmul.mubr.f32.gmra.mxu0 %v203
    %v435 = vpop.f32.mrf.mxu0
    %v436 = vadd.f32 %v365, %v435
    %v437 = vpop.f32.mrf.mxu0
    %v438 = vadd.f32 %v367, %v437
    %439 = vdwg.mxu0
    %v442 = vcombine.low %v436, %v438
    %v444 = vunpack.c.l.s4 1966171168
    %v445 = vunpack.c.0.s8 %v444
    %v446 = vlaneseq
    %v447 = vshrl.u32 %v446, 7
    %v448 = vsub.s32 %v445, %v447
    %v449 = vrot.slane %v442, %v448
    %v451 = vunpack.c.l.s4 1966171168
    %v452 = vunpack.c.0.s8 %v451
    %v453 = vlaneseq
    %v454 = vshrl.u32 %v453, 7
    %v455 = vsub.s32 %v452, %v454
    %v456 = vrot.slane %v449, %v455
    %v458 = vlaneseq
    %vm459 = vcmp.ge.s32.totalorder %v458, 0
    %vm460 = vcmp.lt.s32.totalorder %v458, 168
    %vm461 = vmand %vm459, %vm460
    %462 = vst.msk [vmem:[#allocation2] sm:$0x3] %vm461, %v456
    // Predicated region
    $region10: #{tpu_custom_call.1} parent=1 // pred_check
      _
    $region11: #{tpu_custom_call.1} parent=1 // pred_check_branch
      %464 = sbr.rel (0) target = $region13
    $region12: #{tpu_custom_call.1} parent=1 // pred_region
      %s466 = ssub.s32 32, 32
      %467 = vsyncadd [#allocation3], %s466
      %s469 = sshll.u32 [#allocation2], 4
      %s470 = int_to_ptr.vmem [resolvable:$true] %s469
      %472 = dma.vmem_to_hbm [thread:$0]  %s470, 32, %s2, [#allocation3]
    $region13: #{tpu_custom_call.1} parent=1 // pred_fallthru
      _
    // Predicated region
    $region14: #{tpu_custom_call.1} parent=1 // pred_check
      _
    $region15: #{tpu_custom_call.1} parent=1 // pred_check_branch
      %474 = sbr.rel (0) target = $region17
    $region16: #{tpu_custom_call.1} parent=1 // pred_region
      %475 = dma.done [#allocation3], 32
    $region17: #{tpu_custom_call.1} parent=1 // pred_fallthru
      _
    %476 = vsyncpa [#allocation3], 1

</llo_original>
